<compile_context>
chip_gen: v7x
topology: tpu7x:2x2x1
jax: 0.10.0
libtpu: 0.0.40
codegen_flags: <defaults>
</compile_context>

<pallas_src>
import math
import jax
import jax.numpy as jnp
from jax.experimental import pallas as pl
from jax.experimental.pallas import tpu as pltpu


# ----------------------------------------------------------------------------
# helpers
# ----------------------------------------------------------------------------
def _round_up(n, m):
    return ((n + m - 1) // m) * m


def _padded_dims(D, H, tn):
    """Padded hidden size, number of hidden tiles, padded K = D + Hp."""
    assert tn % 128 == 0, "hidden tile must be a multiple of the 128-lane width"
    Hp = _round_up(H, tn)
    nh = Hp // tn
    Kp = _round_up(D + Hp, 16)          # bf16 packs 16 sublanes per vreg
    return Hp, nh, Kp


# ----------------------------------------------------------------------------
# single-step kernel (tiled over hidden and batch)
# ----------------------------------------------------------------------------
def _lstm_cell_kernel(xh_ref, w_ref, b_ref, c_ref, h_out_ref, c_out_ref):
    # Gate pre-activations for this (batch tile, hidden tile): (tb, 4*tn), f32.
    gates = jnp.dot(xh_ref[...], w_ref[0],
                    preferred_element_type=jnp.float32) + b_ref[...]

    tn = c_ref.shape[-1]                 # lane-aligned gate slices
    i = jax.nn.sigmoid(gates[:, 0 * tn:1 * tn])
    f = jax.nn.sigmoid(gates[:, 1 * tn:2 * tn])
    g = jnp.tanh(gates[:, 2 * tn:3 * tn])
    o = jax.nn.sigmoid(gates[:, 3 * tn:4 * tn])

    c_new = f * c_ref[...] + i * g       # c kept in f32 end to end
    h_new = o * jnp.tanh(c_new)

    c_out_ref[...] = c_new
    h_out_ref[...] = h_new.astype(h_out_ref.dtype)


def lstm_cell_pallas(x, h, c, w_packed, b_packed, *, tn=256, tb=None):
    """x:(B,D), h:(B,H), c:(B,H); w_packed/b_packed from pack_lstm_params.

    Returns (h_1, c_1): h_1 in x.dtype, c_1 in float32, both (B, H).
    """
    B, D = x.shape
    H = h.shape[1]
    Hp, nh, Kp = _padded_dims(D, H, tn)
    assert w_packed.shape == (nh, Kp, 4 * tn), w_packed.shape
    assert b_packed.shape == (1, nh * 4 * tn), b_packed.shape

    Bp = _round_up(B, 8)
    if tb is None:
        tb = Bp if Bp <= 256 else 256
    if Bp % tb:
        Bp = _round_up(Bp, tb)
    nb = Bp // tb
    cdt = w_packed.dtype                 # MXU input dtype (bf16 by default)

    # Fused + padded activations: xh = [x | h | 0] in the compute dtype.
    xh = jnp.zeros((Bp, Kp), cdt)
    xh = xh.at[:B, :D].set(x.astype(cdt))
    xh = xh.at[:B, D:D + H].set(h.astype(cdt))
    c_pad = jnp.zeros((Bp, Hp), jnp.float32).at[:B, :H].set(
        c.astype(jnp.float32))

    w_item = jnp.dtype(cdt).itemsize
    h_item = jnp.dtype(x.dtype).itemsize
    needed = (2 * tb * Kp * w_item            # xh (double-buffered)
              + 2 * Kp * 4 * tn * w_item      # weight tile
              + 2 * 4 * tn * 4                # bias tile
              + 2 * tb * tn * 4               # c tile
              + 2 * tb * tn * (h_item + 4))   # h / c output tiles
    vmem_limit = int(min(56 << 20, max(needed + (8 << 20), 32 << 20)))

    h_out, c_out = pl.pallas_call(
        _lstm_cell_kernel,
        out_shape=(
            jax.ShapeDtypeStruct((Bp, Hp), x.dtype),       # h_1
            jax.ShapeDtypeStruct((Bp, Hp), jnp.float32),   # c_1 (f32)
        ),
        grid=(nh, nb),                                     # hidden x batch tiles
        in_specs=[
            pl.BlockSpec((tb, Kp), lambda j, b: (b, 0)),           # xh
            pl.BlockSpec((1, Kp, 4 * tn), lambda j, b: (j, 0, 0)),  # contiguous W tile
            pl.BlockSpec((1, 4 * tn), lambda j, b: (0, j)),         # bias tile (f32)
            pl.BlockSpec((tb, tn), lambda j, b: (b, j)),            # c tile
        ],
        out_specs=(
            pl.BlockSpec((tb, tn), lambda j, b: (b, j)),
            pl.BlockSpec((tb, tn), lambda j, b: (b, j)),
        ),
        compiler_params=pltpu.CompilerParams(
            dimension_semantics=("parallel", "parallel"),
            vmem_limit_bytes=vmem_limit),
    )(xh, w_packed, b_packed, c_pad)

    return h_out[:B, :H], c_out[:B, :H]


# ----------------------------------------------------------------------------
# sequence kernel: time loop folded in, weights resident in VMEM
# ----------------------------------------------------------------------------
def _lstm_seq_kernel(xs_ref, wx_ref, wh_ref, b_ref, h0_ref, c0_ref,
                     hs_out_ref, c_out_ref, h_sc, c_sc):
    t = pl.program_id(0)

    @pl.when(t == 0)
    def _():
        h_sc[...] = h0_ref[...]
        c_sc[...] = c0_ref[...]

    Hp = c_sc.shape[-1]
    x_t = xs_ref[0]                                   # (Bp, Dp), compute dtype
    h_prev = h_sc[...].astype(wx_ref.dtype)

    gates = (jnp.dot(x_t, wx_ref[...], preferred_element_type=jnp.float32)
             + jnp.dot(h_prev, wh_ref[...], preferred_element_type=jnp.float32)
             + b_ref[...])
    i = jax.nn.sigmoid(gates[:, 0 * Hp:1 * Hp])
    f = jax.nn.sigmoid(gates[:, 1 * Hp:2 * Hp])
    g = jnp.tanh(gates[:, 2 * Hp:3 * Hp])
    o = jax.nn.sigmoid(gates[:, 3 * Hp:4 * Hp])

    c_new = f * c_sc[...] + i * g
    h_new = o * jnp.tanh(c_new)

    c_sc[...] = c_new                                 # f32 carry
    h_sc[...] = h_new                                 # f32 carry
    hs_out_ref[0] = h_new.astype(hs_out_ref.dtype)
    c_out_ref[...] = c_new                            # resident block, flushed once


def lstm_sequence_pallas(xs, h0, c0, wx, wh, b):
    """Apply the LSTM cell over T steps in one kernel (resident weights).

    xs:(T,B,D), h0/c0:(B,H); wx/wh/b from pack_lstm_params_seq.
    Returns (hs:(T,B,H) in xs.dtype, h_T:(B,H), c_T:(B,H) f32).
    """
    T, B, D = xs.shape
    H = h0.shape[1]
    Hp = _round_up(H, 128)
    Dp = _round_up(D, 16)
    assert wx.shape == (Dp, 4 * Hp) and wh.shape == (Hp, 4 * Hp)
    assert b.shape == (1, 4 * Hp)
    Bp = _round_up(B, 8)
    cdt = wx.dtype

    xs_p = jnp.zeros((T, Bp, Dp), cdt).at[:, :B, :D].set(xs.astype(cdt))
    h0_p = jnp.zeros((Bp, Hp), jnp.float32).at[:B, :H].set(h0.astype(jnp.float32))
    c0_p = jnp.zeros((Bp, Hp), jnp.float32).at[:B, :H].set(c0.astype(jnp.float32))

    w_item = jnp.dtype(cdt).itemsize
    needed = (2 * (Dp + Hp) * 4 * Hp * w_item         # resident Wx / Wh
              + 2 * Bp * Dp * w_item                  # x_t stream
              + 2 * 4 * Hp * 4                        # bias
              + 4 * Bp * Hp * 4                       # h0 / c0
              + 2 * Bp * Hp * (jnp.dtype(xs.dtype).itemsize + 4)  # outputs
              + 2 * Bp * Hp * 4)                      # scratch carries
    vmem_limit = int(min(56 << 20, max(needed + (8 << 20), 32 << 20)))

    hs, c_T = pl.pallas_call(
        _lstm_seq_kernel,
        out_shape=(
            jax.ShapeDtypeStruct((T, Bp, Hp), xs.dtype),
            jax.ShapeDtypeStruct((Bp, Hp), jnp.float32),
        ),
        grid=(T,),                                    # sequential, state-carrying
        in_specs=[
            pl.BlockSpec((1, Bp, Dp), lambda t: (t, 0, 0)),    # x_t (streamed)
            pl.BlockSpec((Dp, 4 * Hp), lambda t: (0, 0)),      # Wx (resident)
            pl.BlockSpec((Hp, 4 * Hp), lambda t: (0, 0)),      # Wh (resident)
            pl.BlockSpec((1, 4 * Hp), lambda t: (0, 0)),       # bias (resident)
            pl.BlockSpec((Bp, Hp), lambda t: (0, 0)),          # h0
            pl.BlockSpec((Bp, Hp), lambda t: (0, 0)),          # c0
        ],
        out_specs=(
            pl.BlockSpec((1, Bp, Hp), lambda t: (t, 0, 0)),    # h per step
            pl.BlockSpec((Bp, Hp), lambda t: (0, 0)),          # final c (f32)
        ),
        scratch_shapes=[pltpu.VMEM((Bp, Hp), jnp.float32),     # h carry
                        pltpu.VMEM((Bp, Hp), jnp.float32)],    # c carry
        compiler_params=pltpu.CompilerParams(
            dimension_semantics=("arbitrary",),
            vmem_limit_bytes=vmem_limit),
    )(xs_p, wx, wh, b, h0_p, c0_p)

    return hs[:, :B, :H], hs[-1, :B, :H], c_T[:B, :H]


# ----------------------------------------------------------------------------
# parameters (PyTorch layout) and packing
# ----------------------------------------------------------------------------
def init_lstm_params(key, input_dim, hidden_dim, dtype=jnp.float32):
    """LSTMCell.reset_params(): every parameter ~ U(-1/sqrt(H), 1/sqrt(H))."""
    stdv = 1.0 / math.sqrt(hidden_dim)
    shapes = {
        "w_ii": (input_dim, hidden_dim), "w_hi": (hidden_dim, hidden_dim),
        "b_ii": (hidden_dim,), "b_hi": (hidden_dim,),
        "w_if": (input_dim, hidden_dim), "w_hf": (hidden_dim, hidden_dim),
        "b_if": (hidden_dim,), "b_hf": (hidden_dim,),
        "w_ig": (input_dim, hidden_dim), "w_hg": (hidden_dim, hidden_dim),
        "b_ig": (hidden_dim,), "b_hg": (hidden_dim,),
        "w_io": (input_dim, hidden_dim), "w_ho": (hidden_dim, hidden_dim),
        "b_io": (hidden_dim,), "b_ho": (hidden_dim,),
    }
    names = list(shapes.keys())
    keys = jax.random.split(key, len(names))
    return {n: jax.random.uniform(k, shapes[n], dtype, minval=-stdv, maxval=stdv)
            for n, k in zip(names, keys)}


def pack_lstm_params(p, *, tn=256, dtype=jnp.bfloat16):
    """Tile-major pack of [Wx;Wh] into (nh, Kp, 4*tn): each hidden tile's
    weights (all 4 gates, order [i,f,g,o]) are one contiguous HBM block.
    Paired biases are pre-summed and kept in f32."""
    D, H = p["w_ii"].shape
    Hp, nh, Kp = _padded_dims(D, H, tn)

    wx = jnp.stack([p["w_ii"], p["w_if"], p["w_ig"], p["w_io"]], axis=1)  # (D,4,H)
    wh = jnp.stack([p["w_hi"], p["w_hf"], p["w_hg"], p["w_ho"]], axis=1)  # (H,4,H)
    w = jnp.concatenate([wx, wh], axis=0)                                 # (D+H,4,H)
    w = jnp.pad(w, ((0, Kp - (D + H)), (0, 0), (0, Hp - H)))              # (Kp,4,Hp)
    w = w.reshape(Kp, 4, nh, tn).transpose(2, 0, 1, 3).reshape(nh, Kp, 4 * tn)

    b = jnp.stack([p["b_ii"] + p["b_hi"], p["b_if"] + p["b_hf"],
                   p["b_ig"] + p["b_hg"], p["b_io"] + p["b_ho"]], axis=0)  # (4,H)
    b = jnp.pad(b, ((0, 0), (0, Hp - H)))                                  # (4,Hp)
    b = b.reshape(4, nh, tn).transpose(1, 0, 2).reshape(1, nh * 4 * tn)

    return w.astype(dtype), b.astype(jnp.float32)


def pack_lstm_params_seq(p, *, dtype=jnp.bfloat16):
    """Full (non-tiled) gate-packed Wx:(Dp,4*Hp), Wh:(Hp,4*Hp), b:(1,4*Hp)
    for the resident-weight sequence kernel (gate order [i,f,g,o])."""
    D, H = p["w_ii"].shape
    Hp = _round_up(H, 128)
    Dp = _round_up(D, 16)
    wx = jnp.stack([p["w_ii"], p["w_if"], p["w_ig"], p["w_io"]], axis=1)  # (D,4,H)
    wh = jnp.stack([p["w_hi"], p["w_hf"], p["w_hg"], p["w_ho"]], axis=1)  # (H,4,H)
    wx = jnp.pad(wx, ((0, Dp - D), (0, 0), (0, Hp - H))).reshape(Dp, 4 * Hp)
    wh = jnp.pad(wh, ((0, Hp - H), (0, 0), (0, Hp - H))).reshape(Hp, 4 * Hp)
    b = jnp.stack([p["b_ii"] + p["b_hi"], p["b_if"] + p["b_hf"],
                   p["b_ig"] + p["b_hg"], p["b_io"] + p["b_ho"]], axis=0)  # (4,H)
    b = jnp.pad(b, ((0, 0), (0, Hp - H))).reshape(1, 4 * Hp)
    return wx.astype(dtype), wh.astype(dtype), b.astype(jnp.float32)


# ----------------------------------------------------------------------------
# pure-JAX reference (mirrors the PyTorch forward exactly)
# ----------------------------------------------------------------------------
def lstm_cell_ref(x, h, c, p):
    i = jax.nn.sigmoid(x @ p["w_ii"] + p["b_ii"] + h @ p["w_hi"] + p["b_hi"])
    f = jax.nn.sigmoid(x @ p["w_if"] + p["b_if"] + h @ p["w_hf"] + p["b_hf"])
    g = jnp.tanh(x @ p["w_ig"] + p["b_ig"] + h @ p["w_hg"] + p["b_hg"])
    o = jax.nn.sigmoid(x @ p["w_io"] + p["b_io"] + h @ p["w_ho"] + p["b_ho"])
    new_c = f * c + i * g
    new_h = o * jnp.tanh(new_c)
    return new_h, new_c


def lstm_sequence_ref(xs, h, c, p):
    hs = []
    for t in range(xs.shape[0]):
        h, c = lstm_cell_ref(xs[t], h, c, p)
        hs.append(h)
    return jnp.stack(hs), h, c


if __name__ == "__main__":
    batch, input_dim, hidden_dim, seq_len = 4, 16, 32, 8
    tn = 256
    key = jax.random.PRNGKey(0)
    k_param, k_x, k_h, k_c, k_seq = jax.random.split(key, 5)

    params = init_lstm_params(k_param, input_dim, hidden_dim)
    x = jax.random.normal(k_x, (batch, input_dim), jnp.float32)
    h0 = jax.random.normal(k_h, (batch, hidden_dim), jnp.float32)
    c0 = jax.random.normal(k_c, (batch, hidden_dim), jnp.float32)
    xs = jax.random.normal(k_seq, (seq_len, batch, input_dim), jnp.float32)

    # ---- single-step cell (the module's forward) ----
    h_ref, c_ref = lstm_cell_ref(x, h0, c0, params)

    wp_bf16, bp = pack_lstm_params(params, tn=tn, dtype=jnp.bfloat16)
    h1, c1 = lstm_cell_pallas(x, h0, c0, wp_bf16, bp, tn=tn)
    jax.block_until_ready((h1, c1))
    assert h1.shape == (batch, hidden_dim) and c1.shape == (batch, hidden_dim)
    assert jnp.allclose(h1, h_ref, atol=3e-2, rtol=3e-2)
    assert jnp.allclose(c1, c_ref, atol=3e-2, rtol=3e-2)

    wp_f32, bp32 = pack_lstm_params(params, tn=tn, dtype=jnp.float32)
    h1f, c1f = lstm_cell_pallas(x, h0, c0, wp_f32, bp32, tn=tn)
    jax.block_until_ready((h1f, c1f))
    assert jnp.allclose(h1f, h_ref, atol=1e-5, rtol=1e-5)
    assert jnp.allclose(c1f, c_ref, atol=1e-5, rtol=1e-5)

    # ---- time loop folded into one kernel (weights resident in VMEM) ----
    hs_ref, hT_ref, cT_ref = lstm_sequence_ref(xs, h0, c0, params)

    wxf, whf, bsf = pack_lstm_params_seq(params, dtype=jnp.float32)
    hs_f, hT_f, cT_f = lstm_sequence_pallas(xs, h0, c0, wxf, whf, bsf)
    jax.block_until_ready((hs_f, cT_f))
    assert hs_f.shape == (seq_len, batch, hidden_dim)
    assert jnp.allclose(hs_f, hs_ref, atol=1e-4, rtol=1e-4)
    assert jnp.allclose(cT_f, cT_ref, atol=1e-4, rtol=1e-4)

    wxb, whb, bsb = pack_lstm_params_seq(params, dtype=jnp.bfloat16)
    hs_b, hT_b, cT_b = lstm_sequence_pallas(xs, h0, c0, wxb, whb, bsb)
    jax.block_until_ready((hs_b, cT_b))
    assert jnp.allclose(hs_b, hs_ref, atol=5e-2, rtol=5e-2)
    assert jnp.allclose(cT_b, cT_ref, atol=5e-2, rtol=5e-2)

    print("KERNEL_OK")
</pallas_src>

<mosaic_0001>
module attributes {stable_mosaic.version = 11 : i64} {
  func.func @_lstm_cell_kernel(%arg0: i32, %arg1: i32, %arg2: memref<8x272xbf16, #tpu.memory_space<vmem>>, %arg3: memref<1x272x1024xbf16, #tpu.memory_space<vmem>>, %arg4: memref<1x1024xf32, #tpu.memory_space<vmem>>, %arg5: memref<8x256xf32, #tpu.memory_space<vmem>>, %arg6: memref<8x256xf32, #tpu.memory_space<vmem>>, %arg7: memref<8x256xf32, #tpu.memory_space<vmem>>) attributes {dimension_semantics = [#tpu.dimension_semantics<parallel>, #tpu.dimension_semantics<parallel>], iteration_bounds = array<i64: 1, 1>, scalar_prefetch = 0 : i64, scratch_operands = 0 : i64, tpu.core_type = #tpu.core_type<tc>, window_params = [{transform_indices = @transform_0, window_bounds = array<i64: 8, 272>}, {transform_indices = @transform_1, window_bounds = array<i64: 1, 272, 1024>}, {transform_indices = @transform_2, window_bounds = array<i64: 1, 1024>}, {transform_indices = @transform_3, window_bounds = array<i64: 8, 256>}, {transform_indices = @transform_4, window_bounds = array<i64: 8, 256>}, {transform_indices = @transform_5, window_bounds = array<i64: 8, 256>}]} {
    %c0 = arith.constant 0 : index
    %c0_0 = arith.constant 0 : index
    %0 = vector.load %arg2[%c0, %c0_0] : memref<8x272xbf16, #tpu.memory_space<vmem>>, vector<8x272xbf16>
    %c0_1 = arith.constant 0 : index
    %c0_2 = arith.constant 0 : index
    %c0_3 = arith.constant 0 : index
    %1 = vector.load %arg3[%c0_1, %c0_2, %c0_3] : memref<1x272x1024xbf16, #tpu.memory_space<vmem>>, vector<1x272x1024xbf16>
    %2 = vector.shape_cast %1 : vector<1x272x1024xbf16> to vector<272x1024xbf16>
    %cst = arith.constant dense<0.000000e+00> : vector<8x1024xf32>
    %3 = tpu.matmul %0, %2, %cst {dimension_numbers = #tpu.dot_dimension_numbers<[1], [0], [0], [1], [0, 0, 1, 1], [], []>} : vector<8x272xbf16>, vector<272x1024xbf16>, vector<8x1024xf32> -> vector<8x1024xf32>
    %c0_4 = arith.constant 0 : index
    %c0_5 = arith.constant 0 : index
    %4 = vector.load %arg4[%c0_4, %c0_5] : memref<1x1024xf32, #tpu.memory_space<vmem>>, vector<1x1024xf32>
    %5 = vector.broadcast %4 : vector<1x1024xf32> to vector<8x1024xf32>
    %6 = arith.addf %3, %5 : vector<8x1024xf32>
    %7 = vector.extract_strided_slice %6 {offsets = [0, 0], sizes = [8, 256], strides = [1, 1]} : vector<8x1024xf32> to vector<8x256xf32>
    %8 = arith.negf %7 : vector<8x256xf32>
    %9 = math.exp %8 : vector<8x256xf32>
    %cst_6 = arith.constant 1.000000e+00 : f32
    %10 = vector.broadcast %cst_6 : f32 to vector<8x256xf32>
    %11 = arith.addf %10, %9 : vector<8x256xf32>
    %12 = arith.divf %10, %11 : vector<8x256xf32>
    %13 = vector.extract_strided_slice %6 {offsets = [0, 256], sizes = [8, 256], strides = [1, 1]} : vector<8x1024xf32> to vector<8x256xf32>
    %14 = arith.negf %13 : vector<8x256xf32>
    %15 = math.exp %14 : vector<8x256xf32>
    %cst_7 = arith.constant 1.000000e+00 : f32
    %16 = vector.broadcast %cst_7 : f32 to vector<8x256xf32>
    %17 = arith.addf %16, %15 : vector<8x256xf32>
    %18 = arith.divf %16, %17 : vector<8x256xf32>
    %19 = vector.extract_strided_slice %6 {offsets = [0, 512], sizes = [8, 256], strides = [1, 1]} : vector<8x1024xf32> to vector<8x256xf32>
    %20 = math.tanh %19 : vector<8x256xf32>
    %21 = vector.extract_strided_slice %6 {offsets = [0, 768], sizes = [8, 256], strides = [1, 1]} : vector<8x1024xf32> to vector<8x256xf32>
    %22 = arith.negf %21 : vector<8x256xf32>
    %23 = math.exp %22 : vector<8x256xf32>
    %cst_8 = arith.constant 1.000000e+00 : f32
    %24 = vector.broadcast %cst_8 : f32 to vector<8x256xf32>
    %25 = arith.addf %24, %23 : vector<8x256xf32>
    %26 = arith.divf %24, %25 : vector<8x256xf32>
    %c0_9 = arith.constant 0 : index
    %c0_10 = arith.constant 0 : index
    %27 = vector.load %arg5[%c0_9, %c0_10] : memref<8x256xf32, #tpu.memory_space<vmem>>, vector<8x256xf32>
    %28 = arith.mulf %18, %27 : vector<8x256xf32>
    %29 = arith.mulf %12, %20 : vector<8x256xf32>
    %30 = arith.addf %28, %29 : vector<8x256xf32>
    %31 = math.tanh %30 : vector<8x256xf32>
    %32 = arith.mulf %26, %31 : vector<8x256xf32>
    %c0_11 = arith.constant 0 : index
    %c0_12 = arith.constant 0 : index
    %33 = vector.load %arg7[%c0_11, %c0_12] : memref<8x256xf32, #tpu.memory_space<vmem>>, vector<8x256xf32>
    tpu.vector_store %arg7[%c0_11, %c0_12], %30 {strides = array<i32>} : memref<8x256xf32, #tpu.memory_space<vmem>>, vector<8x256xf32>,
    %c0_13 = arith.constant 0 : index
    %c0_14 = arith.constant 0 : index
    %34 = vector.load %arg6[%c0_13, %c0_14] : memref<8x256xf32, #tpu.memory_space<vmem>>, vector<8x256xf32>
    tpu.vector_store %arg6[%c0_13, %c0_14], %32 {strides = array<i32>} : memref<8x256xf32, #tpu.memory_space<vmem>>, vector<8x256xf32>,
    return
  }
  func.func @transform_0(%arg0: i32, %arg1: i32) -> (i32, i32) {
    %c0_i32 = arith.constant 0 : i32
    %c0_i32_0 = arith.constant 0 : i32
    return %arg1, %c0_i32 : i32, i32
  }
  func.func @transform_1(%arg0: i32, %arg1: i32) -> (i32, i32, i32) {
    %c0_i32 = arith.constant 0 : i32
    %c0_i32_0 = arith.constant 0 : i32
    %c0_i32_1 = arith.constant 0 : i32
    return %arg0, %c0_i32, %c0_i32_0 : i32, i32, i32
  }
  func.func @transform_2(%arg0: i32, %arg1: i32) -> (i32, i32) {
    %c0_i32 = arith.constant 0 : i32
    %c0_i32_0 = arith.constant 0 : i32
    return %c0_i32, %arg0 : i32, i32
  }
  func.func @transform_3(%arg0: i32, %arg1: i32) -> (i32, i32) {
    %c0_i32 = arith.constant 0 : i32
    return %arg1, %arg0 : i32, i32
  }
  func.func @transform_4(%arg0: i32, %arg1: i32) -> (i32, i32) {
    %c0_i32 = arith.constant 0 : i32
    return %arg1, %arg0 : i32, i32
  }
  func.func @transform_5(%arg0: i32, %arg1: i32) -> (i32, i32) {
    %c0_i32 = arith.constant 0 : i32
    return %arg1, %arg0 : i32, i32
  }
}

</mosaic_0001>

<llo_original>
// kernel: tpu_custom_call.1
$region0: #{tpu_custom_call.1}
  #allocation0 [shape = 'u32[]', space=smem, size = 0x4, offset = 0x4, fixed_abs, tag = 'smem constant byte address 0x4 - core index']
  #allocation1 [shape = 'u32[144,128]{1,0:T(1,128)}', space=vmem, size = 0x12000, scoped, tag = 'internal scratch']
  %s0 = inlined_call_operand.hbm [shape: bf16[8,272], index: 0, kind: input, shape index: {}]
  %s1 = inlined_call_operand.hbm [shape: bf16[1,272,1024], index: 1, kind: input, shape index: {}]
  %s2 = inlined_call_operand.hbm [shape: f32[1,1024], index: 2, kind: input, shape index: {}]
  %s3 = inlined_call_operand.hbm [shape: f32[8,256], index: 3, kind: input, shape index: {}]
  %s4 = inlined_call_operand.hbm [shape: f32[8,256], index: 4, kind: output, shape index: {0}]
  %s5 = inlined_call_operand.hbm [shape: f32[8,256], index: 5, kind: output, shape index: {1}]
  %6 = xla_tuple %s4, %s5
  %s7 = sld [smem:[#allocation0]]
  $region50: #{tpu_custom_call.1} parent=0
    _
  %s9 = ssub.s32 1, %s7
  %s10 = scalar_select 0, %s9, %s7
  $region1: #{tpu_custom_call.1} parent=0
    #allocation2 [shape = 'u8[6144]{0}', space=vmem, size = 0x1800, scoped, tag = 'input window, operand 0, single buffered']
    #allocation3 [shape = 's32[1]{0}', space=sflag, size = 0x4, scoped, tag = 'scoped memory for tpu_custom_call.1']
    #allocation4 [shape = 's32[1]{0}', space=sflag, size = 0x4, scoped, tag = 'scoped memory for tpu_custom_call.1']
    #allocation5 [shape = 'u8[557056]{0}', space=vmem, size = 0x88000, scoped, tag = 'input window, operand 1, single buffered']
    #allocation6 [shape = 's32[1]{0}', space=sflag, size = 0x4, scoped, tag = 'scoped memory for tpu_custom_call.1']
    #allocation7 [shape = 'u8[4096]{0}', space=vmem, size = 0x1000, scoped, tag = 'input window, operand 2, single buffered']
    #allocation8 [shape = 'u8[8192]{0}', space=vmem, size = 0x2000, scoped, tag = 'input window, operand 3, single buffered']
    #allocation9 [shape = 's32[1]{0}', space=sflag, size = 0x4, scoped, tag = 'scoped memory for tpu_custom_call.1']
    #allocation10 [shape = 'u8[8192]{0}', space=vmem, size = 0x2000, scoped, tag = 'output window, operand 0, single buffered']
    #allocation11 [shape = 'u8[8192]{0}', space=vmem, size = 0x2000, scoped, tag = 'output window, operand 1, single buffered']
    #allocation12 [shape = 's32[1]{0}', space=sflag, size = 0x4, scoped, tag = 'scoped memory for tpu_custom_call.1']
    %11 = vsyncpa [#allocation3], 0
    %12 = vsyncpa [#allocation6], 0
    %13 = vsyncpa [#allocation9], 0
    %14 = vsyncpa [#allocation4], 0
    %15 = vsyncpa [#allocation12], 0
    // Predicated region
    $region2: #{tpu_custom_call.1} parent=1 // pred_check
      _
    $region3: #{tpu_custom_call.1} parent=1 // pred_check_branch
      %17 = sbr.rel (0) target = $region5
    $region4: #{tpu_custom_call.1} parent=1 // pred_region
      %s19 = ssub.s32 192, 192
      %20 = vsyncadd [#allocation3], %s19
      %s22 = sshll.u32 [#allocation2], 4
      %s23 = int_to_ptr.vmem [resolvable:$true] %s22
      %25 = dma.hbm_to_vmem [thread:$0]  %s0, 192, %s23, [#allocation3]
    $region5: #{tpu_custom_call.1} parent=1 // pred_fallthru
      _
    // Predicated region
    $region6: #{tpu_custom_call.1} parent=1 // pred_check
      _
    $region7: #{tpu_custom_call.1} parent=1 // pred_check_branch
      %27 = sbr.rel (0) target = $region9
    $region8: #{tpu_custom_call.1} parent=1 // pred_region
      %s29 = ssub.s32 17408, 17408
      %30 = vsyncadd [#allocation6], %s29
      %s31 = sshll.u32 [#allocation5], 4
      %s32 = int_to_ptr.vmem [resolvable:$true] %s31
      %37 = dma.hbm_to_vmem [thread:$0]  %s1, 17408, %s32, [#allocation6], 512, 512, 32
    $region9: #{tpu_custom_call.1} parent=1 // pred_fallthru
      _
    // Predicated region
    $region10: #{tpu_custom_call.1} parent=1 // pred_check
      _
    $region11: #{tpu_custom_call.1} parent=1 // pred_check_branch
      %39 = sbr.rel (0) target = $region13
    $region12: #{tpu_custom_call.1} parent=1 // pred_region
      %s41 = ssub.s32 128, 128
      %42 = vsyncadd [#allocation6], %s41
      %s44 = sshll.u32 [#allocation7], 4
      %s45 = int_to_ptr.vmem [resolvable:$true] %s44
      %47 = dma.hbm_to_vmem [thread:$0]  %s2, 128, %s45, [#allocation6]
    $region13: #{tpu_custom_call.1} parent=1 // pred_fallthru
      _
    // Predicated region
    $region14: #{tpu_custom_call.1} parent=1 // pred_check
      _
    $region15: #{tpu_custom_call.1} parent=1 // pred_check_branch
      %49 = sbr.rel (0) target = $region17
    $region16: #{tpu_custom_call.1} parent=1 // pred_region
      %s51 = ssub.s32 256, 256
      %52 = vsyncadd [#allocation9], %s51
      %s54 = sshll.u32 [#allocation8], 4
      %s55 = int_to_ptr.vmem [resolvable:$true] %s54
      %57 = dma.hbm_to_vmem [thread:$0]  %s3, 256, %s55, [#allocation9]
    $region17: #{tpu_custom_call.1} parent=1 // pred_fallthru
      _
    // Predicated region
    $region18: #{tpu_custom_call.1} parent=1 // pred_check
      _
    $region19: #{tpu_custom_call.1} parent=1 // pred_check_branch
      %59 = sbr.rel (0) target = $region21
    $region20: #{tpu_custom_call.1} parent=1 // pred_region
      %60 = dma.done [#allocation3], 192
    $region21: #{tpu_custom_call.1} parent=1 // pred_fallthru
      _
    // Predicated region
    $region22: #{tpu_custom_call.1} parent=1 // pred_check
      _
    $region23: #{tpu_custom_call.1} parent=1 // pred_check_branch
      %62 = sbr.rel (0) target = $region25
    $region24: #{tpu_custom_call.1} parent=1 // pred_region
      %63 = dma.done [#allocation6], 17408
    $region25: #{tpu_custom_call.1} parent=1 // pred_fallthru
      _
    // Predicated region
    $region26: #{tpu_custom_call.1} parent=1 // pred_check
      _
    $region27: #{tpu_custom_call.1} parent=1 // pred_check_branch
      %65 = sbr.rel (0) target = $region29
    $region28: #{tpu_custom_call.1} parent=1 // pred_region
      %66 = dma.done [#allocation6], 128
    $region29: #{tpu_custom_call.1} parent=1 // pred_fallthru
      _
    // Predicated region
    $region30: #{tpu_custom_call.1} parent=1 // pred_check
      _
    $region31: #{tpu_custom_call.1} parent=1 // pred_check_branch
      %68 = sbr.rel (0) target = $region33
    $region32: #{tpu_custom_call.1} parent=1 // pred_region
      %69 = dma.done [#allocation9], 256
    $region33: #{tpu_custom_call.1} parent=1 // pred_fallthru
      _
    %v71 = vld [vmem:[#allocation2] sm:$0xff]
    %v72 = vld [vmem:[#allocation2 + $0x8] sm:$0xf]
    %v73 = vld [vmem:[#allocation5] sm:$0xff]
    %v74 = vld [vmem:[#allocation5 + $0x8] sm:$0xff]
    %v75 = vld [vmem:[#allocation5 + $0x10] sm:$0xff]
    %v76 = vld [vmem:[#allocation5 + $0x18] sm:$0xff]
    %v77 = vld [vmem:[#allocation5 + $0x20] sm:$0xff]
    %v78 = vld [vmem:[#allocation5 + $0x28] sm:$0xff]
    %v79 = vld [vmem:[#allocation5 + $0x30] sm:$0xff]
    %v80 = vld [vmem:[#allocation5 + $0x38] sm:$0xff]
    %v81 = vld [vmem:[#allocation5 + $0x40] sm:$0xff]
    %v82 = vld [vmem:[#allocation5 + $0x48] sm:$0xff]
    %v83 = vld [vmem:[#allocation5 + $0x50] sm:$0xff]
    %v84 = vld [vmem:[#allocation5 + $0x58] sm:$0xff]
    %v85 = vld [vmem:[#allocation5 + $0x60] sm:$0xff]
    %v86 = vld [vmem:[#allocation5 + $0x68] sm:$0xff]
    %v87 = vld [vmem:[#allocation5 + $0x70] sm:$0xff]
    %v88 = vld [vmem:[#allocation5 + $0x78] sm:$0xff]
    %v89 = vld [vmem:[#allocation5 + $0x80] sm:$0xff]
    %v90 = vld [vmem:[#allocation5 + $0x88] sm:$0xff]
    %v91 = vld [vmem:[#allocation5 + $0x90] sm:$0xff]
    %v92 = vld [vmem:[#allocation5 + $0x98] sm:$0xff]
    %v93 = vld [vmem:[#allocation5 + $0xa0] sm:$0xff]
    %v94 = vld [vmem:[#allocation5 + $0xa8] sm:$0xff]
    %v95 = vld [vmem:[#allocation5 + $0xb0] sm:$0xff]
    %v96 = vld [vmem:[#allocation5 + $0xb8] sm:$0xff]
    %v97 = vld [vmem:[#allocation5 + $0xc0] sm:$0xff]
    %v98 = vld [vmem:[#allocation5 + $0xc8] sm:$0xff]
    %v99 = vld [vmem:[#allocation5 + $0xd0] sm:$0xff]
    %v100 = vld [vmem:[#allocation5 + $0xd8] sm:$0xff]
    %v101 = vld [vmem:[#allocation5 + $0xe0] sm:$0xff]
    %v102 = vld [vmem:[#allocation5 + $0xe8] sm:$0xff]
    %v103 = vld [vmem:[#allocation5 + $0xf0] sm:$0xff]
    %v104 = vld [vmem:[#allocation5 + $0xf8] sm:$0xff]
    %v105 = vld [vmem:[#allocation5 + $0x100] sm:$0xff]
    %v106 = vld [vmem:[#allocation5 + $0x108] sm:$0xff]
    %v107 = vld [vmem:[#allocation5 + $0x110] sm:$0xff]
    %v108 = vld [vmem:[#allocation5 + $0x118] sm:$0xff]
    %v109 = vld [vmem:[#allocation5 + $0x120] sm:$0xff]
    %v110 = vld [vmem:[#allocation5 + $0x128] sm:$0xff]
    %v111 = vld [vmem:[#allocation5 + $0x130] sm:$0xff]
    %v112 = vld [vmem:[#allocation5 + $0x138] sm:$0xff]
    %v113 = vld [vmem:[#allocation5 + $0x140] sm:$0xff]
    %v114 = vld [vmem:[#allocation5 + $0x148] sm:$0xff]
    %v115 = vld [vmem:[#allocation5 + $0x150] sm:$0xff]
    %v116 = vld [vmem:[#allocation5 + $0x158] sm:$0xff]
    %v117 = vld [vmem:[#allocation5 + $0x160] sm:$0xff]
    %v118 = vld [vmem:[#allocation5 + $0x168] sm:$0xff]
    %v119 = vld [vmem:[#allocation5 + $0x170] sm:$0xff]
    %v120 = vld [vmem:[#allocation5 + $0x178] sm:$0xff]
    %v121 = vld [vmem:[#allocation5 + $0x180] sm:$0xff]
    %v122 = vld [vmem:[#allocation5 + $0x188] sm:$0xff]
    %v123 = vld [vmem:[#allocation5 + $0x190] sm:$0xff]
    %v124 = vld [vmem:[#allocation5 + $0x198] sm:$0xff]
    %v125 = vld [vmem:[#allocation5 + $0x1a0] sm:$0xff]
    %v126 = vld [vmem:[#allocation5 + $0x1a8] sm:$0xff]
    %v127 = vld [vmem:[#allocation5 + $0x1b0] sm:$0xff]
    %v128 = vld [vmem:[#allocation5 + $0x1b8] sm:$0xff]
    %v129 = vld [vmem:[#allocation5 + $0x1c0] sm:$0xff]
    %v130 = vld [vmem:[#allocation5 + $0x1c8] sm:$0xff]
    %v131 = vld [vmem:[#allocation5 + $0x1d0] sm:$0xff]
    %v132 = vld [vmem:[#allocation5 + $0x1d8] sm:$0xff]
    %v133 = vld [vmem:[#allocation5 + $0x1e0] sm:$0xff]
    %v134 = vld [vmem:[#allocation5 + $0x1e8] sm:$0xff]
    %v135 = vld [vmem:[#allocation5 + $0x1f0] sm:$0xff]
    %v136 = vld [vmem:[#allocation5 + $0x1f8] sm:$0xff]
    %v137 = vld [vmem:[#allocation5 + $0x200] sm:$0xff]
    %v138 = vld [vmem:[#allocation5 + $0x208] sm:$0xff]
    %v139 = vld [vmem:[#allocation5 + $0x210] sm:$0xff]
    %v140 = vld [vmem:[#allocation5 + $0x218] sm:$0xff]
    %v141 = vld [vmem:[#allocation5 + $0x220] sm:$0xff]
    %v142 = vld [vmem:[#allocation5 + $0x228] sm:$0xff]
    %v143 = vld [vmem:[#allocation5 + $0x230] sm:$0xff]
    %v144 = vld [vmem:[#allocation5 + $0x238] sm:$0xff]
    %v145 = vld [vmem:[#allocation5 + $0x240] sm:$0xff]
    %v146 = vld [vmem:[#allocation5 + $0x248] sm:$0xff]
    %v147 = vld [vmem:[#allocation5 + $0x250] sm:$0xff]
    %v148 = vld [vmem:[#allocation5 + $0x258] sm:$0xff]
    %v149 = vld [vmem:[#allocation5 + $0x260] sm:$0xff]
    %v150 = vld [vmem:[#allocation5 + $0x268] sm:$0xff]
    %v151 = vld [vmem:[#allocation5 + $0x270] sm:$0xff]
    %v152 = vld [vmem:[#allocation5 + $0x278] sm:$0xff]
    %v153 = vld [vmem:[#allocation5 + $0x280] sm:$0xff]
    %v154 = vld [vmem:[#allocation5 + $0x288] sm:$0xff]
    %v155 = vld [vmem:[#allocation5 + $0x290] sm:$0xff]
    %v156 = vld [vmem:[#allocation5 + $0x298] sm:$0xff]
    %v157 = vld [vmem:[#allocation5 + $0x2a0] sm:$0xff]
    %v158 = vld [vmem:[#allocation5 + $0x2a8] sm:$0xff]
    %v159 = vld [vmem:[#allocation5 + $0x2b0] sm:$0xff]
    %v160 = vld [vmem:[#allocation5 + $0x2b8] sm:$0xff]
    %v161 = vld [vmem:[#allocation5 + $0x2c0] sm:$0xff]
    %v162 = vld [vmem:[#allocation5 + $0x2c8] sm:$0xff]
    %v163 = vld [vmem:[#allocation5 + $0x2d0] sm:$0xff]
    %v164 = vld [vmem:[#allocation5 + $0x2d8] sm:$0xff]
    %v165 = vld [vmem:[#allocation5 + $0x2e0] sm:$0xff]
    %v166 = vld [vmem:[#allocation5 + $0x2e8] sm:$0xff]
    %v167 = vld [vmem:[#allocation5 + $0x2f0] sm:$0xff]
    %v168 = vld [vmem:[#allocation5 + $0x2f8] sm:$0xff]
    %v169 = vld [vmem:[#allocation5 + $0x300] sm:$0xff]
    %v170 = vld [vmem:[#allocation5 + $0x308] sm:$0xff]
    %v171 = vld [vmem:[#allocation5 + $0x310] sm:$0xff]
    %v172 = vld [vmem:[#allocation5 + $0x318] sm:$0xff]
    %v173 = vld [vmem:[#allocation5 + $0x320] sm:$0xff]
    %v174 = vld [vmem:[#allocation5 + $0x328] sm:$0xff]
    %v175 = vld [vmem:[#allocation5 + $0x330] sm:$0xff]
    %v176 = vld [vmem:[#allocation5 + $0x338] sm:$0xff]
    %v177 = vld [vmem:[#allocation5 + $0x340] sm:$0xff]
    %v178 = vld [vmem:[#allocation5 + $0x348] sm:$0xff]
    %v179 = vld [vmem:[#allocation5 + $0x350] sm:$0xff]
    %v180 = vld [vmem:[#allocation5 + $0x358] sm:$0xff]
    %v181 = vld [vmem:[#allocation5 + $0x360] sm:$0xff]
    %v182 = vld [vmem:[#allocation5 + $0x368] sm:$0xff]
    %v183 = vld [vmem:[#allocation5 + $0x370] sm:$0xff]
    %v184 = vld [vmem:[#allocation5 + $0x378] sm:$0xff]
    %v185 = vld [vmem:[#allocation5 + $0x380] sm:$0xff]
    %v186 = vld [vmem:[#allocation5 + $0x388] sm:$0xff]
    %v187 = vld [vmem:[#allocation5 + $0x390] sm:$0xff]
    %v188 = vld [vmem:[#allocation5 + $0x398] sm:$0xff]
    %v189 = vld [vmem:[#allocation5 + $0x3a0] sm:$0xff]
    %v190 = vld [vmem:[#allocation5 + $0x3a8] sm:$0xff]
    %v191 = vld [vmem:[#allocation5 + $0x3b0] sm:$0xff]
    %v192 = vld [vmem:[#allocation5 + $0x3b8] sm:$0xff]
    %v193 = vld [vmem:[#allocation5 + $0x3c0] sm:$0xff]
    %v194 = vld [vmem:[#allocation5 + $0x3c8] sm:$0xff]
    %v195 = vld [vmem:[#allocation5 + $0x3d0] sm:$0xff]
    %v196 = vld [vmem:[#allocation5 + $0x3d8] sm:$0xff]
    %v197 = vld [vmem:[#allocation5 + $0x3e0] sm:$0xff]
    %v198 = vld [vmem:[#allocation5 + $0x3e8] sm:$0xff]
    %v199 = vld [vmem:[#allocation5 + $0x3f0] sm:$0xff]
    %v200 = vld [vmem:[#allocation5 + $0x3f8] sm:$0xff]
    %v201 = vld [vmem:[#allocation5 + $0x400] sm:$0xff]
    %v202 = vld [vmem:[#allocation5 + $0x408] sm:$0xff]
    %v203 = vld [vmem:[#allocation5 + $0x410] sm:$0xff]
    %v204 = vld [vmem:[#allocation5 + $0x418] sm:$0xff]
    %v205 = vld [vmem:[#allocation5 + $0x420] sm:$0xff]
    %v206 = vld [vmem:[#allocation5 + $0x428] sm:$0xff]
    %v207 = vld [vmem:[#allocation5 + $0x430] sm:$0xff]
    %v208 = vld [vmem:[#allocation5 + $0x438] sm:$0xff]
    %v209 = vld [vmem:[#allocation7] sm:$0xff]
    %v211 = vlaneseq
    %v212 = vshrl.u32 %v211, 7
    %v213 = vsub.s32 0, %v212
    %v214 = vrot.slane %v209, %v213
    %v215 = vlaneseq
    %v216 = vshrl.u32 %v215, 7
    %v217 = vsub.s32 1, %v216
    %v218 = vrot.slane %v209, %v217
    %v219 = vlaneseq
    %v220 = vshrl.u32 %v219, 7
    %v221 = vsub.s32 2, %v220
    %v222 = vrot.slane %v209, %v221
    %v223 = vlaneseq
    %v224 = vshrl.u32 %v223, 7
    %v225 = vsub.s32 3, %v224
    %v226 = vrot.slane %v209, %v225
    %v227 = vlaneseq
    %v228 = vshrl.u32 %v227, 7
    %v229 = vsub.s32 4, %v228
    %v230 = vrot.slane %v209, %v229
    %v231 = vlaneseq
    %v232 = vshrl.u32 %v231, 7
    %v233 = vsub.s32 5, %v232
    %v234 = vrot.slane %v209, %v233
    %v235 = vlaneseq
    %v236 = vshrl.u32 %v235, 7
    %v237 = vsub.s32 6, %v236
    %v238 = vrot.slane %v209, %v237
    %v239 = vlaneseq
    %v240 = vshrl.u32 %v239, 7
    %v241 = vsub.s32 7, %v240
    %v242 = vrot.slane %v209, %v241
    %v253 = vunpack.c.l.b16 %v71
    %v254 = vunpack.c.h.b16 %v71
    %v255 = vunpack.c.l.b16 %v72
    %v256 = vpack.c.b16 %v253, %v253
    %v257 = vpack.c.b16 %v254, %v254
    %v258 = vpack.c.b16 %v255, %v255
    %v397 = vunpack.c.l.b16 %v73
    %v398 = vunpack.c.h.b16 %v73
    %v399 = vunpack.c.l.b16 %v74
    %v400 = vunpack.c.h.b16 %v74
    %v401 = vunpack.c.l.b16 %v75
    %v402 = vunpack.c.h.b16 %v75
    %v403 = vunpack.c.l.b16 %v76
    %v404 = vunpack.c.h.b16 %v76
    %v405 = vunpack.c.l.b16 %v77
    %v406 = vunpack.c.h.b16 %v77
    %v407 = vunpack.c.l.b16 %v78
    %v408 = vunpack.c.h.b16 %v78
    %v409 = vunpack.c.l.b16 %v79
    %v410 = vunpack.c.h.b16 %v79
    %v411 = vunpack.c.l.b16 %v80
    %v412 = vunpack.c.h.b16 %v80
    %v413 = vunpack.c.l.b16 %v81
    %v414 = vunpack.c.h.b16 %v81
    %v415 = vunpack.c.l.b16 %v82
    %v416 = vunpack.c.h.b16 %v82
    %v417 = vunpack.c.l.b16 %v83
    %v418 = vunpack.c.h.b16 %v83
    %v419 = vunpack.c.l.b16 %v84
    %v420 = vunpack.c.h.b16 %v84
    %v421 = vunpack.c.l.b16 %v85
    %v422 = vunpack.c.h.b16 %v85
    %v423 = vunpack.c.l.b16 %v86
    %v424 = vunpack.c.h.b16 %v86
    %v425 = vunpack.c.l.b16 %v87
    %v426 = vunpack.c.h.b16 %v87
    %v427 = vunpack.c.l.b16 %v88
    %v428 = vunpack.c.h.b16 %v88
    %v429 = vunpack.c.l.b16 %v89
    %v430 = vunpack.c.h.b16 %v89
    %v431 = vunpack.c.l.b16 %v90
    %v432 = vunpack.c.h.b16 %v90
    %v433 = vunpack.c.l.b16 %v91
    %v434 = vunpack.c.h.b16 %v91
    %v435 = vunpack.c.l.b16 %v92
    %v436 = vunpack.c.h.b16 %v92
    %v437 = vunpack.c.l.b16 %v93
    %v438 = vunpack.c.h.b16 %v93
    %v439 = vunpack.c.l.b16 %v94
    %v440 = vunpack.c.h.b16 %v94
    %v441 = vunpack.c.l.b16 %v95
    %v442 = vunpack.c.h.b16 %v95
    %v443 = vunpack.c.l.b16 %v96
    %v444 = vunpack.c.h.b16 %v96
    %v445 = vunpack.c.l.b16 %v97
    %v446 = vunpack.c.h.b16 %v97
    %v447 = vunpack.c.l.b16 %v98
    %v448 = vunpack.c.h.b16 %v98
    %v449 = vunpack.c.l.b16 %v99
    %v450 = vunpack.c.h.b16 %v99
    %v451 = vunpack.c.l.b16 %v100
    %v452 = vunpack.c.h.b16 %v100
    %v453 = vunpack.c.l.b16 %v101
    %v454 = vunpack.c.h.b16 %v101
    %v455 = vunpack.c.l.b16 %v102
    %v456 = vunpack.c.h.b16 %v102
    %v457 = vunpack.c.l.b16 %v103
    %v458 = vunpack.c.h.b16 %v103
    %v459 = vunpack.c.l.b16 %v104
    %v460 = vunpack.c.h.b16 %v104
    %v461 = vunpack.c.l.b16 %v105
    %v462 = vunpack.c.h.b16 %v105
    %v463 = vunpack.c.l.b16 %v106
    %v464 = vunpack.c.h.b16 %v106
    %v465 = vunpack.c.l.b16 %v107
    %v466 = vunpack.c.h.b16 %v107
    %v467 = vunpack.c.l.b16 %v108
    %v468 = vunpack.c.h.b16 %v108
    %v469 = vunpack.c.l.b16 %v109
    %v470 = vunpack.c.h.b16 %v109
    %v471 = vunpack.c.l.b16 %v110
    %v472 = vunpack.c.h.b16 %v110
    %v473 = vunpack.c.l.b16 %v111
    %v474 = vunpack.c.h.b16 %v111
    %v475 = vunpack.c.l.b16 %v112
    %v476 = vunpack.c.h.b16 %v112
    %v477 = vunpack.c.l.b16 %v113
    %v478 = vunpack.c.h.b16 %v113
    %v479 = vunpack.c.l.b16 %v114
    %v480 = vunpack.c.h.b16 %v114
    %v481 = vunpack.c.l.b16 %v115
    %v482 = vunpack.c.h.b16 %v115
    %v483 = vunpack.c.l.b16 %v116
    %v484 = vunpack.c.h.b16 %v116
    %v485 = vunpack.c.l.b16 %v117
    %v486 = vunpack.c.h.b16 %v117
    %v487 = vunpack.c.l.b16 %v118
    %v488 = vunpack.c.h.b16 %v118
    %v489 = vunpack.c.l.b16 %v119
    %v490 = vunpack.c.h.b16 %v119
    %v491 = vunpack.c.l.b16 %v120
    %v492 = vunpack.c.h.b16 %v120
    %v493 = vunpack.c.l.b16 %v121
    %v494 = vunpack.c.h.b16 %v121
    %v495 = vunpack.c.l.b16 %v122
    %v496 = vunpack.c.h.b16 %v122
    %v497 = vunpack.c.l.b16 %v123
    %v498 = vunpack.c.h.b16 %v123
    %v499 = vunpack.c.l.b16 %v124
    %v500 = vunpack.c.h.b16 %v124
    %v501 = vunpack.c.l.b16 %v125
    %v502 = vunpack.c.h.b16 %v125
    %v503 = vunpack.c.l.b16 %v126
    %v504 = vunpack.c.h.b16 %v126
    %v505 = vunpack.c.l.b16 %v127
    %v506 = vunpack.c.h.b16 %v127
    %v507 = vunpack.c.l.b16 %v128
    %v508 = vunpack.c.h.b16 %v128
    %v509 = vunpack.c.l.b16 %v129
    %v510 = vunpack.c.h.b16 %v129
    %v511 = vunpack.c.l.b16 %v130
    %v512 = vunpack.c.h.b16 %v130
    %v513 = vunpack.c.l.b16 %v131
    %v514 = vunpack.c.h.b16 %v131
    %v515 = vunpack.c.l.b16 %v132
    %v516 = vunpack.c.h.b16 %v132
    %v517 = vunpack.c.l.b16 %v133
    %v518 = vunpack.c.h.b16 %v133
    %v519 = vunpack.c.l.b16 %v134
    %v520 = vunpack.c.h.b16 %v134
    %v521 = vunpack.c.l.b16 %v135
    %v522 = vunpack.c.h.b16 %v135
    %v523 = vunpack.c.l.b16 %v136
    %v524 = vunpack.c.h.b16 %v136
    %v525 = vunpack.c.l.b16 %v137
    %v526 = vunpack.c.h.b16 %v137
    %v527 = vunpack.c.l.b16 %v138
    %v528 = vunpack.c.h.b16 %v138
    %v529 = vunpack.c.l.b16 %v139
    %v530 = vunpack.c.h.b16 %v139
    %v531 = vunpack.c.l.b16 %v140
    %v532 = vunpack.c.h.b16 %v140
    %v533 = vunpack.c.l.b16 %v141
    %v534 = vunpack.c.h.b16 %v141
    %v535 = vunpack.c.l.b16 %v142
    %v536 = vunpack.c.h.b16 %v142
    %v537 = vunpack.c.l.b16 %v143
    %v538 = vunpack.c.h.b16 %v143
    %v539 = vunpack.c.l.b16 %v144
    %v540 = vunpack.c.h.b16 %v144
    %v541 = vunpack.c.l.b16 %v145
    %v542 = vunpack.c.h.b16 %v145
    %v543 = vunpack.c.l.b16 %v146
    %v544 = vunpack.c.h.b16 %v146
    %v545 = vunpack.c.l.b16 %v147
    %v546 = vunpack.c.h.b16 %v147
    %v547 = vunpack.c.l.b16 %v148
    %v548 = vunpack.c.h.b16 %v148
    %v549 = vunpack.c.l.b16 %v149
    %v550 = vunpack.c.h.b16 %v149
    %v551 = vunpack.c.l.b16 %v150
    %v552 = vunpack.c.h.b16 %v150
    %v553 = vunpack.c.l.b16 %v151
    %v554 = vunpack.c.h.b16 %v151
    %v555 = vunpack.c.l.b16 %v152
    %v556 = vunpack.c.h.b16 %v152
    %v557 = vunpack.c.l.b16 %v153
    %v558 = vunpack.c.h.b16 %v153
    %v559 = vunpack.c.l.b16 %v154
    %v560 = vunpack.c.h.b16 %v154
    %v561 = vunpack.c.l.b16 %v155
    %v562 = vunpack.c.h.b16 %v155
    %v563 = vunpack.c.l.b16 %v156
    %v564 = vunpack.c.h.b16 %v156
    %v565 = vunpack.c.l.b16 %v157
    %v566 = vunpack.c.h.b16 %v157
    %v567 = vunpack.c.l.b16 %v158
    %v568 = vunpack.c.h.b16 %v158
    %v569 = vunpack.c.l.b16 %v159
    %v570 = vunpack.c.h.b16 %v159
    %v571 = vunpack.c.l.b16 %v160
    %v572 = vunpack.c.h.b16 %v160
    %v573 = vunpack.c.l.b16 %v161
    %v574 = vunpack.c.h.b16 %v161
    %v575 = vunpack.c.l.b16 %v162
    %v576 = vunpack.c.h.b16 %v162
    %v577 = vunpack.c.l.b16 %v163
    %v578 = vunpack.c.h.b16 %v163
    %v579 = vunpack.c.l.b16 %v164
    %v580 = vunpack.c.h.b16 %v164
    %v581 = vunpack.c.l.b16 %v165
    %v582 = vunpack.c.h.b16 %v165
    %v583 = vunpack.c.l.b16 %v166
    %v584 = vunpack.c.h.b16 %v166
    %v585 = vunpack.c.l.b16 %v167
    %v586 = vunpack.c.h.b16 %v167
    %v587 = vunpack.c.l.b16 %v168
    %v588 = vunpack.c.h.b16 %v168
    %v589 = vunpack.c.l.b16 %v169
    %v590 = vunpack.c.h.b16 %v169
    %v591 = vunpack.c.l.b16 %v170
    %v592 = vunpack.c.h.b16 %v170
    %v593 = vunpack.c.l.b16 %v171
    %v594 = vunpack.c.h.b16 %v171
    %v595 = vunpack.c.l.b16 %v172
    %v596 = vunpack.c.h.b16 %v172
    %v597 = vunpack.c.l.b16 %v173
    %v598 = vunpack.c.h.b16 %v173
    %v599 = vunpack.c.l.b16 %v174
    %v600 = vunpack.c.h.b16 %v174
    %v601 = vunpack.c.l.b16 %v175
    %v602 = vunpack.c.h.b16 %v175
    %v603 = vunpack.c.l.b16 %v176
    %v604 = vunpack.c.h.b16 %v176
    %v605 = vunpack.c.l.b16 %v177
    %v606 = vunpack.c.h.b16 %v177
    %v607 = vunpack.c.l.b16 %v178
    %v608 = vunpack.c.h.b16 %v178
    %v609 = vunpack.c.l.b16 %v179
    %v610 = vunpack.c.h.b16 %v179
    %v611 = vunpack.c.l.b16 %v180
    %v612 = vunpack.c.h.b16 %v180
    %v613 = vunpack.c.l.b16 %v181
    %v614 = vunpack.c.h.b16 %v181
    %v615 = vunpack.c.l.b16 %v182
    %v616 = vunpack.c.h.b16 %v182
    %v617 = vunpack.c.l.b16 %v183
    %v618 = vunpack.c.h.b16 %v183
    %v619 = vunpack.c.l.b16 %v184
    %v620 = vunpack.c.h.b16 %v184
    %v621 = vunpack.c.l.b16 %v185
    %v622 = vunpack.c.h.b16 %v185
    %v623 = vunpack.c.l.b16 %v186
    %v624 = vunpack.c.h.b16 %v186
    %v625 = vunpack.c.l.b16 %v187
    %v626 = vunpack.c.h.b16 %v187
    %v627 = vunpack.c.l.b16 %v188
    %v628 = vunpack.c.h.b16 %v188
    %v629 = vunpack.c.l.b16 %v189
    %v630 = vunpack.c.h.b16 %v189
    %v631 = vunpack.c.l.b16 %v190
    %v632 = vunpack.c.h.b16 %v190
    %v633 = vunpack.c.l.b16 %v191
    %v634 = vunpack.c.h.b16 %v191
    %v635 = vunpack.c.l.b16 %v192
    %v636 = vunpack.c.h.b16 %v192
    %v637 = vunpack.c.l.b16 %v193
    %v638 = vunpack.c.h.b16 %v193
    %v639 = vunpack.c.l.b16 %v194
    %v640 = vunpack.c.h.b16 %v194
    %v641 = vunpack.c.l.b16 %v195
    %v642 = vunpack.c.h.b16 %v195
    %v643 = vunpack.c.l.b16 %v196
    %v644 = vunpack.c.h.b16 %v196
    %v645 = vunpack.c.l.b16 %v197
    %v646 = vunpack.c.h.b16 %v197
    %v647 = vunpack.c.l.b16 %v198
    %v648 = vunpack.c.h.b16 %v198
    %v649 = vunpack.c.l.b16 %v199
    %v650 = vunpack.c.h.b16 %v199
    %v651 = vunpack.c.l.b16 %v200
    %v652 = vunpack.c.h.b16 %v200
    %v653 = vunpack.c.l.b16 %v201
    %v654 = vunpack.c.h.b16 %v201
    %v655 = vunpack.c.l.b16 %v202
    %v656 = vunpack.c.h.b16 %v202
    %v657 = vunpack.c.l.b16 %v203
    %v658 = vunpack.c.h.b16 %v203
    %v659 = vunpack.c.l.b16 %v204
    %v660 = vunpack.c.h.b16 %v204
    %v661 = vunpack.c.l.b16 %v205
    %v662 = vunpack.c.h.b16 %v205
    %v663 = vunpack.c.l.b16 %v206
    %v664 = vunpack.c.h.b16 %v206
    %v665 = vunpack.c.l.b16 %v207
    %v666 = vunpack.c.h.b16 %v207
    %v667 = vunpack.c.l.b16 %v208
    %v668 = vunpack.c.h.b16 %v208
    %v669 = vpack.c.b16 %v405, %v397
    %v670 = vpack.c.b16 %v406, %v398
    %v671 = vpack.c.b16 %v407, %v399
    %v672 = vpack.c.b16 %v408, %v400
    %v673 = vpack.c.b16 %v409, %v401
    %v674 = vpack.c.b16 %v410, %v402
    %v675 = vpack.c.b16 %v411, %v403
    %v676 = vpack.c.b16 %v412, %v404
    %v677 = vpack.c.b16 %v421, %v413
    %v678 = vpack.c.b16 %v422, %v414
    %v679 = vpack.c.b16 %v423, %v415
    %v680 = vpack.c.b16 %v424, %v416
    %v681 = vpack.c.b16 %v425, %v417
    %v682 = vpack.c.b16 %v426, %v418
    %v683 = vpack.c.b16 %v427, %v419
    %v684 = vpack.c.b16 %v428, %v420
    %v685 = vpack.c.b16 %v437, %v429
    %v686 = vpack.c.b16 %v438, %v430
    %v687 = vpack.c.b16 %v439, %v431
    %v688 = vpack.c.b16 %v440, %v432
    %v689 = vpack.c.b16 %v441, %v433
    %v690 = vpack.c.b16 %v442, %v434
    %v691 = vpack.c.b16 %v443, %v435
    %v692 = vpack.c.b16 %v444, %v436
    %v693 = vpack.c.b16 %v453, %v445
    %v694 = vpack.c.b16 %v454, %v446
    %v695 = vpack.c.b16 %v455, %v447
    %v696 = vpack.c.b16 %v456, %v448
    %v697 = vpack.c.b16 %v457, %v449
    %v698 = vpack.c.b16 %v458, %v450
    %v699 = vpack.c.b16 %v459, %v451
    %v700 = vpack.c.b16 %v460, %v452
    %v701 = vpack.c.b16 %v469, %v461
    %v702 = vpack.c.b16 %v470, %v462
    %v703 = vpack.c.b16 %v471, %v463
    %v704 = vpack.c.b16 %v472, %v464
    %v705 = vpack.c.b16 %v473, %v465
    %v706 = vpack.c.b16 %v474, %v466
    %v707 = vpack.c.b16 %v475, %v467
    %v708 = vpack.c.b16 %v476, %v468
    %v709 = vpack.c.b16 %v485, %v477
    %v710 = vpack.c.b16 %v486, %v478
    %v711 = vpack.c.b16 %v487, %v479
    %v712 = vpack.c.b16 %v488, %v480
    %v713 = vpack.c.b16 %v489, %v481
    %v714 = vpack.c.b16 %v490, %v482
    %v715 = vpack.c.b16 %v491, %v483
    %v716 = vpack.c.b16 %v492, %v484
    %v717 = vpack.c.b16 %v501, %v493
    %v718 = vpack.c.b16 %v502, %v494
    %v719 = vpack.c.b16 %v503, %v495
    %v720 = vpack.c.b16 %v504, %v496
    %v721 = vpack.c.b16 %v505, %v497
    %v722 = vpack.c.b16 %v506, %v498
    %v723 = vpack.c.b16 %v507, %v499
    %v724 = vpack.c.b16 %v508, %v500
    %v725 = vpack.c.b16 %v517, %v509
    %v726 = vpack.c.b16 %v518, %v510
    %v727 = vpack.c.b16 %v519, %v511
    %v728 = vpack.c.b16 %v520, %v512
    %v729 = vpack.c.b16 %v521, %v513
    %v730 = vpack.c.b16 %v522, %v514
    %v731 = vpack.c.b16 %v523, %v515
    %v732 = vpack.c.b16 %v524, %v516
    %v733 = vpack.c.b16 %v533, %v525
    %v734 = vpack.c.b16 %v534, %v526
    %v735 = vpack.c.b16 %v535, %v527
    %v736 = vpack.c.b16 %v536, %v528
    %v737 = vpack.c.b16 %v537, %v529
    %v738 = vpack.c.b16 %v538, %v530
    %v739 = vpack.c.b16 %v539, %v531
    %v740 = vpack.c.b16 %v540, %v532
    %v741 = vpack.c.b16 %v549, %v541
    %v742 = vpack.c.b16 %v550, %v542
    %v743 = vpack.c.b16 %v551, %v543
    %v744 = vpack.c.b16 %v552, %v544
    %v745 = vpack.c.b16 %v553, %v545
    %v746 = vpack.c.b16 %v554, %v546
    %v747 = vpack.c.b16 %v555, %v547
    %v748 = vpack.c.b16 %v556, %v548
    %v749 = vpack.c.b16 %v565, %v557
    %v750 = vpack.c.b16 %v566, %v558
    %v751 = vpack.c.b16 %v567, %v559
    %v752 = vpack.c.b16 %v568, %v560
    %v753 = vpack.c.b16 %v569, %v561
    %v754 = vpack.c.b16 %v570, %v562
    %v755 = vpack.c.b16 %v571, %v563
    %v756 = vpack.c.b16 %v572, %v564
    %v757 = vpack.c.b16 %v581, %v573
    %v758 = vpack.c.b16 %v582, %v574
    %v759 = vpack.c.b16 %v583, %v575
    %v760 = vpack.c.b16 %v584, %v576
    %v761 = vpack.c.b16 %v585, %v577
    %v762 = vpack.c.b16 %v586, %v578
    %v763 = vpack.c.b16 %v587, %v579
    %v764 = vpack.c.b16 %v588, %v580
    %v765 = vpack.c.b16 %v597, %v589
    %v766 = vpack.c.b16 %v598, %v590
    %v767 = vpack.c.b16 %v599, %v591
    %v768 = vpack.c.b16 %v600, %v592
    %v769 = vpack.c.b16 %v601, %v593
    %v770 = vpack.c.b16 %v602, %v594
    %v771 = vpack.c.b16 %v603, %v595
    %v772 = vpack.c.b16 %v604, %v596
    %v773 = vpack.c.b16 %v613, %v605
    %v774 = vpack.c.b16 %v614, %v606
    %v775 = vpack.c.b16 %v615, %v607
    %v776 = vpack.c.b16 %v616, %v608
    %v777 = vpack.c.b16 %v617, %v609
    %v778 = vpack.c.b16 %v618, %v610
    %v779 = vpack.c.b16 %v619, %v611
    %v780 = vpack.c.b16 %v620, %v612
    %v781 = vpack.c.b16 %v629, %v621
    %v782 = vpack.c.b16 %v630, %v622
    %v783 = vpack.c.b16 %v631, %v623
    %v784 = vpack.c.b16 %v632, %v624
    %v785 = vpack.c.b16 %v633, %v625
    %v786 = vpack.c.b16 %v634, %v626
    %v787 = vpack.c.b16 %v635, %v627
    %v788 = vpack.c.b16 %v636, %v628
    %v789 = vpack.c.b16 %v645, %v637
    %v790 = vpack.c.b16 %v646, %v638
    %v791 = vpack.c.b16 %v647, %v639
    %v792 = vpack.c.b16 %v648, %v640
    %v793 = vpack.c.b16 %v649, %v641
    %v794 = vpack.c.b16 %v650, %v642
    %v795 = vpack.c.b16 %v651, %v643
    %v796 = vpack.c.b16 %v652, %v644
    %v797 = vpack.c.b16 %v661, %v653
    %v798 = vpack.c.b16 %v662, %v654
    %v799 = vpack.c.b16 %v663, %v655
    %v800 = vpack.c.b16 %v664, %v656
    %v801 = vpack.c.b16 %v665, %v657
    %v802 = vpack.c.b16 %v666, %v658
    %v803 = vpack.c.b16 %v667, %v659
    %v804 = vpack.c.b16 %v668, %v660
    %vm941 = vcmask 130048
    %v943 = vsel %vm941, %v258, 0
    %945 = vmatprep.subr.bf16.mxu0 %v670
    %946 = vmatpush1.bf16.msra.mxu0 %v669
    %947 = vmatprep.subr.bf16.mxu0 %v678
    %948 = vmatpush1.bf16.msra.mxu0 %v677
    %949 = vmatprep.subr.bf16.mxu0 %v686
    %950 = vmatpush1.bf16.msra.mxu0 %v685
    %951 = vmatprep.subr.bf16.mxu0 %v694
    %952 = vmatpush1.bf16.msra.mxu0 %v693
    %953 = vmatprep.subr.bf16.mxu0 %v702
    %954 = vmatpush1.bf16.msra.mxu0 %v701
    %955 = vmatprep.subr.bf16.mxu0 %v710
    %956 = vmatpush1.bf16.msra.mxu0 %v709
    %957 = vmatprep.subr.bf16.mxu0 %v718
    %958 = vmatpush1.bf16.msra.mxu0 %v717
    %959 = vmatprep.subr.bf16.mxu0 %v726
    %960 = vmatpush1.bf16.msra.mxu0 %v725
    %961 = vmatprep.subr.bf16.mxu0 %v734
    %962 = vmatpush1.bf16.msra.mxu0 %v733
    %963 = vmatprep.subr.bf16.mxu0 %v742
    %964 = vmatpush1.bf16.msra.mxu0 %v741
    %965 = vmatprep.subr.bf16.mxu0 %v750
    %966 = vmatpush1.bf16.msra.mxu0 %v749
    %967 = vmatprep.subr.bf16.mxu0 %v758
    %968 = vmatpush1.bf16.msra.mxu0 %v757
    %969 = vmatprep.subr.bf16.mxu0 %v766
    %970 = vmatpush1.bf16.msra.mxu0 %v765
    %971 = vmatprep.subr.bf16.mxu0 %v774
    %972 = vmatpush1.bf16.msra.mxu0 %v773
    %973 = vmatprep.subr.bf16.mxu0 %v782
    %974 = vmatpush1.bf16.msra.mxu0 %v781
    %975 = vmatprep.subr.bf16.mxu0 %v790
    %976 = vmatpush1.bf16.msra.mxu0 %v789
    %977 = vmatprep.mubr.bf16.mxu0 %v257
    %978 = vmatmul.mubr.bf16.gmra.mrb[0].mxu0 %v256
    %v979 = vpop.f32.mrb[0].mxu0
    %v980 = vadd.f32 %v214, %v979
    %v981 = vpop.f32.mrb[0].mxu0
    %v982 = vadd.f32 %v218, %v981
    %v983 = vpop.f32.mrb[0].mxu0
    %v984 = vpop.f32.mrb[0].mxu0
    %985 = vdwg.mxu0
    %986 = vmatprep.subr.bf16.mxu0 %v798
    %987 = vmatpush1.bf16.msra.mxu0 %v797
    %988 = vmatprep.subr.bf16.mxu0 0
    %989 = vmatpush1.bf16.msra.mxu0 0
    %990 = vmatprep.subr.bf16.mxu0 0
    %991 = vmatpush1.bf16.msra.mxu0 0
    %992 = vmatprep.subr.bf16.mxu0 0
    %993 = vmatpush1.bf16.msra.mxu0 0
    %994 = vmatprep.subr.bf16.mxu0 0
    %995 = vmatpush1.bf16.msra.mxu0 0
    %996 = vmatprep.subr.bf16.mxu0 0
    %997 = vmatpush1.bf16.msra.mxu0 0
    %998 = vmatprep.subr.bf16.mxu0 0
    %999 = vmatpush1.bf16.msra.mxu0 0
    %1000 = vmatprep.subr.bf16.mxu0 0
    %1001 = vmatpush1.bf16.msra.mxu0 0
    %1002 = vmatprep.subr.bf16.mxu0 0
    %1003 = vmatpush1.bf16.msra.mxu0 0
    %1004 = vmatprep.subr.bf16.mxu0 0
    %1005 = vmatpush1.bf16.msra.mxu0 0
    %1006 = vmatprep.subr.bf16.mxu0 0
    %1007 = vmatpush1.bf16.msra.mxu0 0
    %1008 = vmatprep.subr.bf16.mxu0 0
    %1009 = vmatpush1.bf16.msra.mxu0 0
    %1010 = vmatprep.subr.bf16.mxu0 0
    %1011 = vmatpush1.bf16.msra.mxu0 0
    %1012 = vmatprep.subr.bf16.mxu0 0
    %1013 = vmatpush1.bf16.msra.mxu0 0
    %1014 = vmatprep.subr.bf16.mxu0 0
    %1015 = vmatpush1.bf16.msra.mxu0 0
    %1016 = vmatprep.subr.bf16.mxu0 0
    %1017 = vmatpush1.bf16.msra.mxu0 0
    %1018 = vmatprep.mubr.bf16.mxu0 0
    %1019 = vmatmul.mubr.bf16.gmra.mrb[0].mxu0 %v943
    %v1020 = vpop.f32.mrb[0].mxu0
    %v1021 = vadd.f32 %v980, %v1020
    %v1022 = vpop.f32.mrb[0].mxu0
    %v1023 = vadd.f32 %v982, %v1022
    %v1024 = vpop.f32.mrb[0].mxu0
    %v1025 = vpop.f32.mrb[0].mxu0
    %1026 = vdwg.mxu0
    %1027 = vmatprep.subr.bf16.mxu0 %v672
    %1028 = vmatpush1.bf16.msra.mxu0 %v671
    %1029 = vmatprep.subr.bf16.mxu0 %v680
    %1030 = vmatpush1.bf16.msra.mxu0 %v679
    %1031 = vmatprep.subr.bf16.mxu0 %v688
    %1032 = vmatpush1.bf16.msra.mxu0 %v687
    %1033 = vmatprep.subr.bf16.mxu0 %v696
    %1034 = vmatpush1.bf16.msra.mxu0 %v695
    %1035 = vmatprep.subr.bf16.mxu0 %v704
    %1036 = vmatpush1.bf16.msra.mxu0 %v703
    %1037 = vmatprep.subr.bf16.mxu0 %v712
    %1038 = vmatpush1.bf16.msra.mxu0 %v711
    %1039 = vmatprep.subr.bf16.mxu0 %v720
    %1040 = vmatpush1.bf16.msra.mxu0 %v719
    %1041 = vmatprep.subr.bf16.mxu0 %v728
    %1042 = vmatpush1.bf16.msra.mxu0 %v727
    %1043 = vmatprep.subr.bf16.mxu0 %v736
    %1044 = vmatpush1.bf16.msra.mxu0 %v735
    %1045 = vmatprep.subr.bf16.mxu0 %v744
    %1046 = vmatpush1.bf16.msra.mxu0 %v743
    %1047 = vmatprep.subr.bf16.mxu0 %v752
    %1048 = vmatpush1.bf16.msra.mxu0 %v751
    %1049 = vmatprep.subr.bf16.mxu0 %v760
    %1050 = vmatpush1.bf16.msra.mxu0 %v759
    %1051 = vmatprep.subr.bf16.mxu0 %v768
    %1052 = vmatpush1.bf16.msra.mxu0 %v767
    %1053 = vmatprep.subr.bf16.mxu0 %v776
    %1054 = vmatpush1.bf16.msra.mxu0 %v775
    %1055 = vmatprep.subr.bf16.mxu0 %v784
    %1056 = vmatpush1.bf16.msra.mxu0 %v783
    %1057 = vmatprep.subr.bf16.mxu0 %v792
    %1058 = vmatpush1.bf16.msra.mxu0 %v791
    %1059 = vmatprep.mubr.bf16.mxu0 %v257
    %1060 = vmatmul.mubr.bf16.gmra.mrb[0].mxu0 %v256
    %v1061 = vpop.f32.mrb[0].mxu0
    %v1062 = vadd.f32 %v222, %v1061
    %v1063 = vpop.f32.mrb[0].mxu0
    %v1064 = vadd.f32 %v226, %v1063
    %v1065 = vpop.f32.mrb[0].mxu0
    %v1066 = vpop.f32.mrb[0].mxu0
    %1067 = vdwg.mxu0
    %1068 = vmatprep.subr.bf16.mxu0 %v800
    %1069 = vmatpush1.bf16.msra.mxu0 %v799
    %1070 = vmatprep.subr.bf16.mxu0 0
    %1071 = vmatpush1.bf16.msra.mxu0 0
    %1072 = vmatprep.subr.bf16.mxu0 0
    %1073 = vmatpush1.bf16.msra.mxu0 0
    %1074 = vmatprep.subr.bf16.mxu0 0
    %1075 = vmatpush1.bf16.msra.mxu0 0
    %1076 = vmatprep.subr.bf16.mxu0 0
    %1077 = vmatpush1.bf16.msra.mxu0 0
    %1078 = vmatprep.subr.bf16.mxu0 0
    %1079 = vmatpush1.bf16.msra.mxu0 0
    %1080 = vmatprep.subr.bf16.mxu0 0
    %1081 = vmatpush1.bf16.msra.mxu0 0
    %1082 = vmatprep.subr.bf16.mxu0 0
    %1083 = vmatpush1.bf16.msra.mxu0 0
    %1084 = vmatprep.subr.bf16.mxu0 0
    %1085 = vmatpush1.bf16.msra.mxu0 0
    %1086 = vmatprep.subr.bf16.mxu0 0
    %1087 = vmatpush1.bf16.msra.mxu0 0
    %1088 = vmatprep.subr.bf16.mxu0 0
    %1089 = vmatpush1.bf16.msra.mxu0 0
    %1090 = vmatprep.subr.bf16.mxu0 0
    %1091 = vmatpush1.bf16.msra.mxu0 0
    %1092 = vmatprep.subr.bf16.mxu0 0
    %1093 = vmatpush1.bf16.msra.mxu0 0
    %1094 = vmatprep.subr.bf16.mxu0 0
    %1095 = vmatpush1.bf16.msra.mxu0 0
    %1096 = vmatprep.subr.bf16.mxu0 0
    %1097 = vmatpush1.bf16.msra.mxu0 0
    %1098 = vmatprep.subr.bf16.mxu0 0
    %1099 = vmatpush1.bf16.msra.mxu0 0
    %1100 = vmatprep.mubr.bf16.mxu0 0
    %1101 = vmatmul.mubr.bf16.gmra.mrb[0].mxu0 %v943
    %v1102 = vpop.f32.mrb[0].mxu0
    %v1103 = vadd.f32 %v1062, %v1102
    %v1104 = vpop.f32.mrb[0].mxu0
    %v1105 = vadd.f32 %v1064, %v1104
    %v1106 = vpop.f32.mrb[0].mxu0
    %v1107 = vpop.f32.mrb[0].mxu0
    %1108 = vdwg.mxu0
    %1109 = vmatprep.subr.bf16.mxu0 %v674
    %1110 = vmatpush1.bf16.msra.mxu0 %v673
    %1111 = vmatprep.subr.bf16.mxu0 %v682
    %1112 = vmatpush1.bf16.msra.mxu0 %v681
    %1113 = vmatprep.subr.bf16.mxu0 %v690
    %1114 = vmatpush1.bf16.msra.mxu0 %v689
    %1115 = vmatprep.subr.bf16.mxu0 %v698
    %1116 = vmatpush1.bf16.msra.mxu0 %v697
    %1117 = vmatprep.subr.bf16.mxu0 %v706
    %1118 = vmatpush1.bf16.msra.mxu0 %v705
    %1119 = vmatprep.subr.bf16.mxu0 %v714
    %1120 = vmatpush1.bf16.msra.mxu0 %v713
    %1121 = vmatprep.subr.bf16.mxu0 %v722
    %1122 = vmatpush1.bf16.msra.mxu0 %v721
    %1123 = vmatprep.subr.bf16.mxu0 %v730
    %1124 = vmatpush1.bf16.msra.mxu0 %v729
    %1125 = vmatprep.subr.bf16.mxu0 %v738
    %1126 = vmatpush1.bf16.msra.mxu0 %v737
    %1127 = vmatprep.subr.bf16.mxu0 %v746
    %1128 = vmatpush1.bf16.msra.mxu0 %v745
    %1129 = vmatprep.subr.bf16.mxu0 %v754
    %1130 = vmatpush1.bf16.msra.mxu0 %v753
    %1131 = vmatprep.subr.bf16.mxu0 %v762
    %1132 = vmatpush1.bf16.msra.mxu0 %v761
    %1133 = vmatprep.subr.bf16.mxu0 %v770
    %1134 = vmatpush1.bf16.msra.mxu0 %v769
    %1135 = vmatprep.subr.bf16.mxu0 %v778
    %1136 = vmatpush1.bf16.msra.mxu0 %v777
    %1137 = vmatprep.subr.bf16.mxu0 %v786
    %1138 = vmatpush1.bf16.msra.mxu0 %v785
    %1139 = vmatprep.subr.bf16.mxu0 %v794
    %1140 = vmatpush1.bf16.msra.mxu0 %v793
    %1141 = vmatprep.mubr.bf16.mxu0 %v257
    %1142 = vmatmul.mubr.bf16.gmra.mrb[0].mxu0 %v256
    %v1143 = vpop.f32.mrb[0].mxu0
    %v1144 = vadd.f32 %v230, %v1143
    %v1145 = vpop.f32.mrb[0].mxu0
    %v1146 = vadd.f32 %v234, %v1145
    %v1147 = vpop.f32.mrb[0].mxu0
    %v1148 = vpop.f32.mrb[0].mxu0
    %1149 = vdwg.mxu0
    %1150 = vmatprep.subr.bf16.mxu0 %v802
    %1151 = vmatpush1.bf16.msra.mxu0 %v801
    %1152 = vmatprep.subr.bf16.mxu0 0
    %1153 = vmatpush1.bf16.msra.mxu0 0
    %1154 = vmatprep.subr.bf16.mxu0 0
    %1155 = vmatpush1.bf16.msra.mxu0 0
    %1156 = vmatprep.subr.bf16.mxu0 0
    %1157 = vmatpush1.bf16.msra.mxu0 0
    %1158 = vmatprep.subr.bf16.mxu0 0
    %1159 = vmatpush1.bf16.msra.mxu0 0
    %1160 = vmatprep.subr.bf16.mxu0 0
    %1161 = vmatpush1.bf16.msra.mxu0 0
    %1162 = vmatprep.subr.bf16.mxu0 0
    %1163 = vmatpush1.bf16.msra.mxu0 0
    %1164 = vmatprep.subr.bf16.mxu0 0
    %1165 = vmatpush1.bf16.msra.mxu0 0
    %1166 = vmatprep.subr.bf16.mxu0 0
    %1167 = vmatpush1.bf16.msra.mxu0 0
    %1168 = vmatprep.subr.bf16.mxu0 0
    %1169 = vmatpush1.bf16.msra.mxu0 0
    %1170 = vmatprep.subr.bf16.mxu0 0
    %1171 = vmatpush1.bf16.msra.mxu0 0
    %1172 = vmatprep.subr.bf16.mxu0 0
    %1173 = vmatpush1.bf16.msra.mxu0 0
    %1174 = vmatprep.subr.bf16.mxu0 0
    %1175 = vmatpush1.bf16.msra.mxu0 0
    %1176 = vmatprep.subr.bf16.mxu0 0
    %1177 = vmatpush1.bf16.msra.mxu0 0
    %1178 = vmatprep.subr.bf16.mxu0 0
    %1179 = vmatpush1.bf16.msra.mxu0 0
    %1180 = vmatprep.subr.bf16.mxu0 0
    %1181 = vmatpush1.bf16.msra.mxu0 0
    %1182 = vmatprep.mubr.bf16.mxu0 0
    %1183 = vmatmul.mubr.bf16.gmra.mrb[0].mxu0 %v943
    %v1184 = vpop.f32.mrb[0].mxu0
    %v1185 = vadd.f32 %v1144, %v1184
    %v1186 = vpop.f32.mrb[0].mxu0
    %v1187 = vadd.f32 %v1146, %v1186
    %v1188 = vpop.f32.mrb[0].mxu0
    %v1189 = vpop.f32.mrb[0].mxu0
    %1190 = vdwg.mxu0
    %1191 = vmatprep.subr.bf16.mxu0 %v676
    %1192 = vmatpush1.bf16.msra.mxu0 %v675
    %1193 = vmatprep.subr.bf16.mxu0 %v684
    %1194 = vmatpush1.bf16.msra.mxu0 %v683
    %1195 = vmatprep.subr.bf16.mxu0 %v692
    %1196 = vmatpush1.bf16.msra.mxu0 %v691
    %1197 = vmatprep.subr.bf16.mxu0 %v700
    %1198 = vmatpush1.bf16.msra.mxu0 %v699
    %1199 = vmatprep.subr.bf16.mxu0 %v708
    %1200 = vmatpush1.bf16.msra.mxu0 %v707
    %1201 = vmatprep.subr.bf16.mxu0 %v716
    %1202 = vmatpush1.bf16.msra.mxu0 %v715
    %1203 = vmatprep.subr.bf16.mxu0 %v724
    %1204 = vmatpush1.bf16.msra.mxu0 %v723
    %1205 = vmatprep.subr.bf16.mxu0 %v732
    %1206 = vmatpush1.bf16.msra.mxu0 %v731
    %1207 = vmatprep.subr.bf16.mxu0 %v740
    %1208 = vmatpush1.bf16.msra.mxu0 %v739
    %1209 = vmatprep.subr.bf16.mxu0 %v748
    %1210 = vmatpush1.bf16.msra.mxu0 %v747
    %1211 = vmatprep.subr.bf16.mxu0 %v756
    %1212 = vmatpush1.bf16.msra.mxu0 %v755
    %1213 = vmatprep.subr.bf16.mxu0 %v764
    %1214 = vmatpush1.bf16.msra.mxu0 %v763
    %1215 = vmatprep.subr.bf16.mxu0 %v772
    %1216 = vmatpush1.bf16.msra.mxu0 %v771
    %1217 = vmatprep.subr.bf16.mxu0 %v780
    %1218 = vmatpush1.bf16.msra.mxu0 %v779
    %1219 = vmatprep.subr.bf16.mxu0 %v788
    %1220 = vmatpush1.bf16.msra.mxu0 %v787
    %1221 = vmatprep.subr.bf16.mxu0 %v796
    %1222 = vmatpush1.bf16.msra.mxu0 %v795
    %1223 = vmatprep.mubr.bf16.mxu0 %v257
    %1224 = vmatmul.mubr.bf16.gmra.mrb[0].mxu0 %v256
    %v1225 = vpop.f32.mrb[0].mxu0
    %v1226 = vadd.f32 %v238, %v1225
    %v1227 = vpop.f32.mrb[0].mxu0
    %v1228 = vadd.f32 %v242, %v1227
    %v1229 = vpop.f32.mrb[0].mxu0
    %v1230 = vpop.f32.mrb[0].mxu0
    %1231 = vdwg.mxu0
    %1232 = vmatprep.subr.bf16.mxu0 %v804
    %1233 = vmatpush1.bf16.msra.mxu0 %v803
    %1234 = vmatprep.subr.bf16.mxu0 0
    %1235 = vmatpush1.bf16.msra.mxu0 0
    %1236 = vmatprep.subr.bf16.mxu0 0
    %1237 = vmatpush1.bf16.msra.mxu0 0
    %1238 = vmatprep.subr.bf16.mxu0 0
    %1239 = vmatpush1.bf16.msra.mxu0 0
    %1240 = vmatprep.subr.bf16.mxu0 0
    %1241 = vmatpush1.bf16.msra.mxu0 0
    %1242 = vmatprep.subr.bf16.mxu0 0
    %1243 = vmatpush1.bf16.msra.mxu0 0
    %1244 = vmatprep.subr.bf16.mxu0 0
    %1245 = vmatpush1.bf16.msra.mxu0 0
    %1246 = vmatprep.subr.bf16.mxu0 0
    %1247 = vmatpush1.bf16.msra.mxu0 0
    %1248 = vmatprep.subr.bf16.mxu0 0
    %1249 = vmatpush1.bf16.msra.mxu0 0
    %1250 = vmatprep.subr.bf16.mxu0 0
    %1251 = vmatpush1.bf16.msra.mxu0 0
    %1252 = vmatprep.subr.bf16.mxu0 0
    %1253 = vmatpush1.bf16.msra.mxu0 0
    %1254 = vmatprep.subr.bf16.mxu0 0
    %1255 = vmatpush1.bf16.msra.mxu0 0
    %1256 = vmatprep.subr.bf16.mxu0 0
    %1257 = vmatpush1.bf16.msra.mxu0 0
    %1258 = vmatprep.subr.bf16.mxu0 0
    %1259 = vmatpush1.bf16.msra.mxu0 0
    %1260 = vmatprep.subr.bf16.mxu0 0
    %1261 = vmatpush1.bf16.msra.mxu0 0
    %1262 = vmatprep.subr.bf16.mxu0 0
    %1263 = vmatpush1.bf16.msra.mxu0 0
    %1264 = vmatprep.mubr.bf16.mxu0 0
    %1265 = vmatmul.mubr.bf16.gmra.mrb[0].mxu0 %v943
    %v1266 = vpop.f32.mrb[0].mxu0
    %v1267 = vadd.f32 %v1226, %v1266
    %v1268 = vpop.f32.mrb[0].mxu0
    %v1269 = vadd.f32 %v1228, %v1268
    %v1270 = vpop.f32.mrb[0].mxu0
    %v1271 = vpop.f32.mrb[0].mxu0
    %1272 = vdwg.mxu0
    %v1273 = vxor.u32 %v1021, 2147483648
    %v1274 = vxor.u32 %v1023, 2147483648
    %v1275 = vmul.f32 %v1273, 1.442695
    %v1276 = vpow.pop %v1275
    %v1277 = vmul.f32 %v1274, 1.442695
    %v1278 = vpow.pop %v1277
    %v1279 = vadd.f32 %v1276, 1.0
    %v1280 = vadd.f32 %v1278, 1.0
    %v1281 = vrcp.pop %v1279
    %v1282 = vmul.f32 1.0, %v1281
    %v1283 = vrcp.pop %v1280
    %v1284 = vmul.f32 1.0, %v1283
    %v1285 = vxor.u32 %v1103, 2147483648
    %v1286 = vxor.u32 %v1105, 2147483648
    %v1287 = vmul.f32 %v1285, 1.442695
    %v1288 = vpow.pop %v1287
    %v1289 = vmul.f32 %v1286, 1.442695
    %v1290 = vpow.pop %v1289
    %v1291 = vadd.f32 %v1288, 1.0
    %v1292 = vadd.f32 %v1290, 1.0
    %v1293 = vrcp.pop %v1291
    %v1294 = vmul.f32 1.0, %v1293
    %v1295 = vrcp.pop %v1292
    %v1296 = vmul.f32 1.0, %v1295
    %v1297 = vtanh.pop %v1185
    %v1298 = vtanh.pop %v1187
    %v1299 = vxor.u32 %v1267, 2147483648
    %v1300 = vxor.u32 %v1269, 2147483648
    %v1301 = vmul.f32 %v1299, 1.442695
    %v1302 = vpow.pop %v1301
    %v1303 = vmul.f32 %v1300, 1.442695
    %v1304 = vpow.pop %v1303
    %v1305 = vadd.f32 %v1302, 1.0
    %v1306 = vadd.f32 %v1304, 1.0
    %v1307 = vrcp.pop %v1305
    %v1308 = vmul.f32 1.0, %v1307
    %v1309 = vrcp.pop %v1306
    %v1310 = vmul.f32 1.0, %v1309
    %v1311 = vld [vmem:[#allocation8] sm:$0xff]
    %v1312 = vld [vmem:[#allocation8 + $0x8] sm:$0xff]
    %v1313 = vmul.f32 %v1294, %v1311
    %v1314 = vmul.f32 %v1296, %v1312
    %v1315 = vmul.f32 %v1282, %v1297
    %v1316 = vmul.f32 %v1284, %v1298
    %v1317 = vadd.f32 %v1313, %v1315
    %v1318 = vadd.f32 %v1314, %v1316
    %v1319 = vtanh.pop %v1317
    %v1320 = vtanh.pop %v1318
    %v1321 = vmul.f32 %v1308, %v1319
    %v1322 = vmul.f32 %v1310, %v1320
    %1323 = vst [vmem:[#allocation11] sm:$0xff] %v1317
    %1324 = vst [vmem:[#allocation11 + $0x8] sm:$0xff] %v1318
    %1325 = vst [vmem:[#allocation10] sm:$0xff] %v1321
    %1326 = vst [vmem:[#allocation10 + $0x8] sm:$0xff] %v1322
    // Predicated region
    $region34: #{tpu_custom_call.1} parent=1 // pred_check
      _
    $region35: #{tpu_custom_call.1} parent=1 // pred_check_branch
      %1328 = sbr.rel (0) target = $region37
    $region36: #{tpu_custom_call.1} parent=1 // pred_region
      %s1330 = ssub.s32 256, 256
      %1331 = vsyncadd [#allocation4], %s1330
      %s1333 = sshll.u32 [#allocation10], 4
      %s1334 = int_to_ptr.vmem [resolvable:$true] %s1333
      %1336 = dma.vmem_to_hbm [thread:$0]  %s1334, 256, %s4, [#allocation4]
    $region37: #{tpu_custom_call.1} parent=1 // pred_fallthru
      _
    // Predicated region
    $region38: #{tpu_custom_call.1} parent=1 // pred_check
      _
    $region39: #{tpu_custom_call.1} parent=1 // pred_check_branch
      %1338 = sbr.rel (0) target = $region41
    $region40: #{tpu_custom_call.1} parent=1 // pred_region
      %s1340 = ssub.s32 256, 256
      %1341 = vsyncadd [#allocation12], %s1340
      %s1343 = sshll.u32 [#allocation11], 4
      %s1344 = int_to_ptr.vmem [resolvable:$true] %s1343
      %1346 = dma.vmem_to_hbm [thread:$0]  %s1344, 256, %s5, [#allocation12]
    $region41: #{tpu_custom_call.1} parent=1 // pred_fallthru
      _
    // Predicated region
    $region42: #{tpu_custom_call.1} parent=1 // pred_check
      _
    $region43: #{tpu_custom_call.1} parent=1 // pred_check_branch
      %1348 = sbr.rel (0) target = $region45
    $region44: #{tpu_custom_call.1} parent=1 // pred_region
      %1349 = dma.done [#allocation4], 256
    $region45: #{tpu_custom_call.1} parent=1 // pred_fallthru
      _
    // Predicated region
    $region46: #{tpu_custom_call.1} parent=1 // pred_check
      _
    $region47: #{tpu_custom_call.1} parent=1 // pred_check_branch
      %1351 = sbr.rel (0) target = $region49
    $region48: #{tpu_custom_call.1} parent=1 // pred_region
      %1352 = dma.done [#allocation12], 256
    $region49: #{tpu_custom_call.1} parent=1 // pred_fallthru
      _
    %1353 = vsyncpa [#allocation3], 1
    %1354 = vsyncpa [#allocation6], 1
    %1355 = vsyncpa [#allocation9], 1
    %1356 = vsyncpa [#allocation4], 1
    %1357 = vsyncpa [#allocation12], 1

</llo_original>
